<compile_context>
chip_gen: v5e
topology: v5e:2x2
jax: 0.10.0
libtpu: 0.0.40
codegen_flags: <defaults>
</compile_context>

<pallas_src>
import jax
import jax.numpy as jnp
import numpy as np
from jax.experimental import pallas as pl
from jax.experimental.pallas import tpu as pltpu


# ----------------------------------------------------------------------------
# Haar filter construction (matches the PyTorch module's buffers exactly).
# ----------------------------------------------------------------------------
def _haar_kernels():
    lp = (np.array([1.0, 1.0]) / np.sqrt(2.0)).astype(np.float32)
    hp = (np.array([1.0, -1.0]) / np.sqrt(2.0)).astype(np.float32)
    ll = np.outer(lp, lp).astype(np.float32)
    lh = np.outer(lp, hp).astype(np.float32)
    hl = np.outer(hp, lp).astype(np.float32)
    hh = np.outer(hp, hp).astype(np.float32)
    return ll, lh, hl, hh


def _haar_matrix(w):
    """(2W, 2W) matrix: super-row [x[2i, :], x[2i+1, :]] @ M = [LL|LH|HL|HH]."""
    ll, lh, hl, hh = _haar_kernels()
    wo = w // 2
    m = np.zeros((2 * w, 2 * w), dtype=np.float32)
    for band, k in enumerate((ll, lh, hl, hh)):
        for j in range(wo):
            for p in (0, 1):        # vertical offset inside the 2x2 window
                for q in (0, 1):    # horizontal offset inside the 2x2 window
                    # conv2d: out[i,j] = sum_{p,q} k[p,q] * x[2i+p, 2j+q]
                    m[p * w + 2 * j + q, band * wo + j] = k[p, q]
    return m


# ----------------------------------------------------------------------------
# Generation-aware tiling plan.
# ----------------------------------------------------------------------------
def _tpu_generation():
    try:
        kind = jax.devices()[0].device_kind.lower()
    except Exception:
        return "unknown"
    if "v7" in kind:
        return "v7x"
    if "v6" in kind:
        return "v6e"
    if "v5" in kind:
        return "v5"
    return "unknown"


# (row-block VMEM budget, vmem_limit_bytes cap, MXU row alignment)
_VMEM_PLAN = {
    "v7x":     (44 << 20, 56 << 20, 256),   # 64 MiB physical VMEM
    "v6e":     (80 << 20, 100 << 20, 256),  # 128 MiB physical VMEM
    "v5":      (64 << 20, 100 << 20, 128),  # 128 MiB physical, 128-wide MXU
    "unknown": (40 << 20, 48 << 20, 256),
}


def _plan_tiles(b, rows, w, out_bytes, gen):
    """Pick the row block from the FULL per-step VMEM footprint."""
    budget, cap, align = _VMEM_PLAN[gen]
    lanes, wo = 2 * w, w // 2
    m_bytes = lanes * lanes * 2                     # bf16 band matrix, 1 buffer
    if m_bytes >= budget:
        raise ValueError(
            f"Haar band matrix ({m_bytes / 2**20:.1f} MiB bf16) exceeds the "
            f"{budget >> 20} MiB VMEM budget; use the separable formulation "
            "for this W.")
    per_row = (lanes * 4 * 2                        # x block (f32, 2 buffers)
               + wo * out_bytes * 2                 # LL block (2 buffers)
               + 3 * wo * out_bytes * 2             # HF block (2 buffers)
               + lanes * 4)                         # f32 matmul result
    max_rows = max(8, (budget - m_bytes) // per_row)
    if rows <= max_rows:
        row_blk = rows                              # single full block of rows
    elif max_rows >= align:
        row_blk = (max_rows // align) * align       # MXU-shaped M dimension
    else:
        row_blk = (max_rows // 8) * 8               # sublane-aligned fallback
    # Keep >= 2 parallel grid steps so both v7x TensorCores get work.
    if b == 1 and rows >= 16:
        half = (((rows + 1) // 2) + 7) // 8 * 8
        row_blk = min(row_blk, half)
    row_blk = min(max(row_blk, 8), rows)
    footprint = m_bytes + row_blk * per_row
    vmem_limit = int(min(cap, max(32 << 20, footprint + (8 << 20))))
    return row_blk, vmem_limit


# ----------------------------------------------------------------------------
# Kernel
# ----------------------------------------------------------------------------
def _dwt_kernel(x_ref, m_ref, ll_ref, hf_ref):
    # x_ref:  (1, row_blk, 2W)  f32 super-rows (adjacent input-row pairs)
    # m_ref:  (2W, 2W)          bf16 constant band matrix (grid-invariant)
    # ll_ref: (1, row_blk, W/2)
    # hf_ref: (1, 3, row_blk, W/2)  bands ordered (LH, HL, HH)
    wo = m_ref.shape[1] // 4
    # Single-pass bf16 MXU matmul with f32 accumulation.  The Haar weights
    # are exactly +/-0.5 in bf16, so the only rounding is the bf16 cast of
    # the x tile (identical to XLA's DEFAULT f32 matmul precision on TPU).
    p = jnp.dot(x_ref[0].astype(jnp.bfloat16), m_ref[...],
                preferred_element_type=jnp.float32)           # (row_blk, 2W)
    # Lane slices are vreg-aligned whenever W/2 is a multiple of 128
    # (true for production W >= 256); for tiny W the masked stores are noise.
    ll_ref[0] = p[:, 0 * wo:1 * wo].astype(ll_ref.dtype)
    hf_ref[0, 0] = p[:, 1 * wo:2 * wo].astype(hf_ref.dtype)   # LH
    hf_ref[0, 1] = p[:, 2 * wo:3 * wo].astype(hf_ref.dtype)   # HL
    hf_ref[0, 2] = p[:, 3 * wo:4 * wo].astype(hf_ref.dtype)   # HH


# ----------------------------------------------------------------------------
# Wrapper
# ----------------------------------------------------------------------------
def dwt_pallas(x, out_dtype=None):
    """x: (B, C, H, W) -> (LL: (B,C,H/2,W/2), HF: (B,3C,H/2,W/2))."""
    b, c, h, w = x.shape
    assert h % 2 == 0 and w % 2 == 0, "Haar DWT needs even H and W"
    ho, wo = h // 2, w // 2
    rows = c * ho                     # one super-row per (channel, output row)
    lanes = 2 * w                     # super-row length
    out_dtype = x.dtype if out_dtype is None else jnp.dtype(out_dtype)
    out_bytes = jnp.dtype(out_dtype).itemsize

    gen = _tpu_generation()
    row_blk, vmem_limit = _plan_tiles(b, rows, w, out_bytes, gen)
    grid = (b, pl.cdiv(rows, row_blk))           # partial last row block OK:
                                                 # the map is purely row-wise.

    # bf16 band matrix: entries are exactly +/-0.5, so this is lossless.
    m = jnp.asarray(_haar_matrix(w), dtype=jnp.bfloat16)
    x_r = x.reshape(b, rows, lanes)              # free view, no data movement

    flops = 2 * b * rows * lanes * lanes         # bf16 1-pass matmul FLOPs
    bytes_accessed = int(x_r.size * x.dtype.itemsize
                         + 4 * b * rows * wo * out_bytes
                         + m.size * 2)

    ll, hf = pl.pallas_call(
        _dwt_kernel,
        out_shape=(
            jax.ShapeDtypeStruct((b, rows, wo), out_dtype),
            jax.ShapeDtypeStruct((b, 3, rows, wo), out_dtype),
        ),
        grid_spec=pltpu.PrefetchScalarGridSpec(
            num_scalar_prefetch=0,
            grid=grid,
            in_specs=[
                pl.BlockSpec((1, row_blk, lanes), lambda bi, r: (bi, r, 0)),
                # Grid-invariant constant: single buffer, never re-DMA'd.
                pl.BlockSpec((lanes, lanes), lambda bi, r: (0, 0),
                             pipeline_mode=pl.Buffered(1)),
            ],
            out_specs=[
                pl.BlockSpec((1, row_blk, wo), lambda bi, r: (bi, r, 0)),
                pl.BlockSpec((1, 3, row_blk, wo), lambda bi, r: (bi, 0, r, 0)),
            ],
        ),
        compiler_params=pltpu.CompilerParams(
            dimension_semantics=("parallel", "parallel"),
            vmem_limit_bytes=vmem_limit),
        cost_estimate=pl.CostEstimate(flops=int(flops), transcendentals=0,
                                      bytes_accessed=bytes_accessed),
    )(x_r, m)

    # Free reshapes back to NCHW conventions; HF band order (LH, HL, HH)
    # matches torch.cat([LH, HL, HH], dim=1).
    ll_out = ll.reshape(b, c, ho, wo)
    hf_out = hf.reshape(b, 3 * c, ho, wo)
    return ll_out, hf_out


# ----------------------------------------------------------------------------
# Pure-JAX reference (mirrors the PyTorch forward exactly, in f32)
# ----------------------------------------------------------------------------
def dwt_ref(x):
    ll_k, lh_k, hl_k, hh_k = [jnp.asarray(k) for k in _haar_kernels()]
    a = x[:, :, 0::2, 0::2]
    bb = x[:, :, 0::2, 1::2]
    cc = x[:, :, 1::2, 0::2]
    d = x[:, :, 1::2, 1::2]

    def band(k):
        return k[0, 0] * a + k[0, 1] * bb + k[1, 0] * cc + k[1, 1] * d

    ll = band(ll_k)
    hf = jnp.concatenate([band(lh_k), band(hl_k), band(hh_k)], axis=1)
    return ll, hf


if __name__ == "__main__":
    B, C, H, W = 2, 4, 16, 16
    key = jax.random.PRNGKey(0)
    x = jax.random.normal(key, (B, C, H, W), jnp.float32)

    ll, hf = dwt_pallas(x)
    ll = jax.block_until_ready(ll)
    hf = jax.block_until_ready(hf)

    ll_r, hf_r = dwt_ref(x)
    ll_r = jax.block_until_ready(ll_r)
    hf_r = jax.block_until_ready(hf_r)

    assert ll.shape == (B, C, H // 2, W // 2)
    assert hf.shape == (B, 3 * C, H // 2, W // 2)

    # Tolerance reflects the 1-pass bf16 MXU path (the x operand is rounded
    # to bf16, exactly like XLA's DEFAULT f32 matmul precision on TPU); the
    # +/-0.5 Haar weights themselves are exact, and accumulation is f32.
    np.testing.assert_allclose(np.asarray(ll), np.asarray(ll_r),
                               rtol=3e-2, atol=3e-2)
    np.testing.assert_allclose(np.asarray(hf), np.asarray(hf_r),
                               rtol=3e-2, atol=3e-2)

    print("KERNEL_OK")
</pallas_src>

<mosaic_0001>
module attributes {stable_mosaic.version = 11 : i64} {
  func.func @_dwt_kernel(%arg0: i32, %arg1: i32, %arg2: memref<1x32x32xf32, #tpu.memory_space<vmem>>, %arg3: memref<32x32xbf16, #tpu.memory_space<vmem>>, %arg4: memref<1x32x8xf32, #tpu.memory_space<vmem>>, %arg5: memref<1x3x32x8xf32, #tpu.memory_space<vmem>>) attributes {dimension_semantics = [#tpu.dimension_semantics<parallel>, #tpu.dimension_semantics<parallel>], iteration_bounds = array<i64: 2, 1>, scalar_prefetch = 0 : i64, scratch_operands = 0 : i64, tpu.core_type = #tpu.core_type<tc>, window_params = [{transform_indices = @transform_0, window_bounds = array<i64: 1, 32, 32>}, {pipeline_mode = #tpu.pipeline_mode<synchronous>, transform_indices = @transform_1, window_bounds = array<i64: 32, 32>}, {transform_indices = @transform_2, window_bounds = array<i64: 1, 32, 8>}, {transform_indices = @transform_3, window_bounds = array<i64: 1, 3, 32, 8>}]} {
    %c0 = arith.constant 0 : index
    %c0_0 = arith.constant 0 : index
    %c0_1 = arith.constant 0 : index
    %0 = vector.load %arg2[%c0, %c0_0, %c0_1] : memref<1x32x32xf32, #tpu.memory_space<vmem>>, vector<1x32x32xf32>
    %1 = vector.shape_cast %0 : vector<1x32x32xf32> to vector<32x32xf32>
    %2 = arith.truncf %1 : vector<32x32xf32> to vector<32x32xbf16>
    %c0_2 = arith.constant 0 : index
    %c0_3 = arith.constant 0 : index
    %3 = vector.load %arg3[%c0_2, %c0_3] : memref<32x32xbf16, #tpu.memory_space<vmem>>, vector<32x32xbf16>
    %cst = arith.constant dense<0.000000e+00> : vector<32x32xf32>
    %4 = tpu.matmul %2, %3, %cst {dimension_numbers = #tpu.dot_dimension_numbers<[1], [0], [0], [1], [0, 0, 1, 1], [], []>} : vector<32x32xbf16>, vector<32x32xbf16>, vector<32x32xf32> -> vector<32x32xf32>
    %5 = vector.extract_strided_slice %4 {offsets = [0, 0], sizes = [32, 8], strides = [1, 1]} : vector<32x32xf32> to vector<32x8xf32>
    %c0_4 = arith.constant 0 : index
    %c0_5 = arith.constant 0 : index
    %c0_6 = arith.constant 0 : index
    %6 = vector.load %arg4[%c0_4, %c0_5, %c0_6] : memref<1x32x8xf32, #tpu.memory_space<vmem>>, vector<1x32x8xf32>
    %7 = vector.shape_cast %6 : vector<1x32x8xf32> to vector<32x8xf32>
    %8 = vector.shape_cast %5 : vector<32x8xf32> to vector<1x32x8xf32>
    tpu.vector_store %arg4[%c0_4, %c0_5, %c0_6], %8 {strides = array<i32>} : memref<1x32x8xf32, #tpu.memory_space<vmem>>, vector<1x32x8xf32>,
    %9 = vector.extract_strided_slice %4 {offsets = [0, 8], sizes = [32, 8], strides = [1, 1]} : vector<32x32xf32> to vector<32x8xf32>
    %c0_7 = arith.constant 0 : index
    %c0_8 = arith.constant 0 : index
    %c0_9 = arith.constant 0 : index
    %c0_10 = arith.constant 0 : index
    %10 = vector.load %arg5[%c0_7, %c0_8, %c0_9, %c0_10] : memref<1x3x32x8xf32, #tpu.memory_space<vmem>>, vector<1x1x32x8xf32>
    %11 = vector.shape_cast %10 : vector<1x1x32x8xf32> to vector<32x8xf32>
    %12 = vector.shape_cast %9 : vector<32x8xf32> to vector<1x1x32x8xf32>
    tpu.vector_store %arg5[%c0_7, %c0_8, %c0_9, %c0_10], %12 {strides = array<i32>} : memref<1x3x32x8xf32, #tpu.memory_space<vmem>>, vector<1x1x32x8xf32>,
    %13 = vector.extract_strided_slice %4 {offsets = [0, 16], sizes = [32, 8], strides = [1, 1]} : vector<32x32xf32> to vector<32x8xf32>
    %c0_11 = arith.constant 0 : index
    %c1 = arith.constant 1 : index
    %c0_12 = arith.constant 0 : index
    %c0_13 = arith.constant 0 : index
    %14 = vector.load %arg5[%c0_11, %c1, %c0_12, %c0_13] : memref<1x3x32x8xf32, #tpu.memory_space<vmem>>, vector<1x1x32x8xf32>
    %15 = vector.shape_cast %14 : vector<1x1x32x8xf32> to vector<32x8xf32>
    %16 = vector.shape_cast %13 : vector<32x8xf32> to vector<1x1x32x8xf32>
    tpu.vector_store %arg5[%c0_11, %c1, %c0_12, %c0_13], %16 {strides = array<i32>} : memref<1x3x32x8xf32, #tpu.memory_space<vmem>>, vector<1x1x32x8xf32>,
    %17 = vector.extract_strided_slice %4 {offsets = [0, 24], sizes = [32, 8], strides = [1, 1]} : vector<32x32xf32> to vector<32x8xf32>
    %c0_14 = arith.constant 0 : index
    %c2 = arith.constant 2 : index
    %c0_15 = arith.constant 0 : index
    %c0_16 = arith.constant 0 : index
    %18 = vector.load %arg5[%c0_14, %c2, %c0_15, %c0_16] : memref<1x3x32x8xf32, #tpu.memory_space<vmem>>, vector<1x1x32x8xf32>
    %19 = vector.shape_cast %18 : vector<1x1x32x8xf32> to vector<32x8xf32>
    %20 = vector.shape_cast %17 : vector<32x8xf32> to vector<1x1x32x8xf32>
    tpu.vector_store %arg5[%c0_14, %c2, %c0_15, %c0_16], %20 {strides = array<i32>} : memref<1x3x32x8xf32, #tpu.memory_space<vmem>>, vector<1x1x32x8xf32>,
    return
  }
  func.func @transform_0(%arg0: i32, %arg1: i32) -> (i32, i32, i32) {
    %c0_i32 = arith.constant 0 : i32
    %c0_i32_0 = arith.constant 0 : i32
    return %arg0, %arg1, %c0_i32 : i32, i32, i32
  }
  func.func @transform_1(%arg0: i32, %arg1: i32) -> (i32, i32) {
    %c0_i32 = arith.constant 0 : i32
    %c0_i32_0 = arith.constant 0 : i32
    %c0_i32_1 = arith.constant 0 : i32
    return %c0_i32, %c0_i32_0 : i32, i32
  }
  func.func @transform_2(%arg0: i32, %arg1: i32) -> (i32, i32, i32) {
    %c0_i32 = arith.constant 0 : i32
    %c0_i32_0 = arith.constant 0 : i32
    return %arg0, %arg1, %c0_i32 : i32, i32, i32
  }
  func.func @transform_3(%arg0: i32, %arg1: i32) -> (i32, i32, i32, i32) {
    %c0_i32 = arith.constant 0 : i32
    %c0_i32_0 = arith.constant 0 : i32
    %c0_i32_1 = arith.constant 0 : i32
    return %arg0, %c0_i32, %arg1, %c0_i32_0 : i32, i32, i32, i32
  }
}

</mosaic_0001>

<llo_original>
// kernel: tpu_custom_call.1
$region0: #{tpu_custom_call.1}
  #allocation0 [shape = 'u32[]', space=smem, size = 0x4, offset = 0x4, fixed_abs, tag = 'smem constant byte address 0x4 - core index']
  #allocation1 [shape = 'u32[72,128]{1,0:T(1,128)}', space=vmem, size = 0x9000, scoped, tag = 'internal scratch']
  %s0 = inlined_call_operand.hbm [shape: f32[2,32,32], index: 0, kind: input, shape index: {}]
  %s1 = inlined_call_operand.hbm [shape: bf16[32,32], index: 1, kind: input, shape index: {}]
  %s2 = inlined_call_operand.vmem [shape: f32[2,32,8], index: 2, kind: output, shape index: {0}]
  %s3 = inlined_call_operand.vmem [shape: f32[2,3,32,8], index: 3, kind: output, shape index: {1}]
  %4 = xla_tuple %s2, %s3
  %s5 = sld [smem:[#allocation0]]
  $region57: #{tpu_custom_call.1} parent=0
    _
  %s7 = ssub.s32 1, %s5
  %s8 = scalar_select 0, %s7, %s5
  $region1: #{tpu_custom_call.1} parent=0
    #allocation2 [shape = 'u8[32768]{0}', space=vmem, size = 0x8000, scoped, tag = 'input window, operand 0']
    #allocation3 [shape = 's32[2]{0}', space=sflag, size = 0x8, scoped, tag = 'scoped memory for tpu_custom_call.1']
    #allocation4 [shape = 'u8[8192]{0}', space=vmem, size = 0x2000, scoped, tag = 'input window, operand 1, single buffered']
    #allocation5 [shape = 's32[1]{0}', space=sflag, size = 0x4, scoped, tag = 'scoped memory for tpu_custom_call.1']
    %9 = vsyncpa [#allocation3], 0
    %s10 = scalar_lea.sflag [#allocation3], 1
    %11 = vsyncpa %s10, 0
    %12 = vsyncpa [#allocation5], 0
    loop: start=0, step=1, limit=4
    $region2: #{tpu_custom_call.1} parent=1 // loop_pre_header
      _
    $region3: #{tpu_custom_call.1} parent=1 // loop_header
      %s14 = sphi 0, %s18
      %p15 = scmp.ge.s32.totalorder %s14, 4
      %s21 = sphi 0, %s33
      %s22 = sphi 0, %s29
      %s23 = sphi 0, %s21
      %s24 = sphi 0, %s22
      %s25 = sphi 0, %s23
      %s26 = sphi 0, %s24
      %s38 = sphi 0, %s40
      %s41 = sphi 0, %s38
      %s42 = sphi 0, %s41
      %s58 = sphi 0, %s42
      %s62 = sphi 0, %s62
      %s64 = sphi 0, %s62
      %s65 = sphi 0, %s64
      %s79 = sphi 0, %s65
      %s87 = sphi 0, %s89
      %s90 = sphi 0, %s87
      %s91 = sphi 0, %s90
      %s107 = sphi 0, %s91
      %s115 = sphi 0, %s117
      %s118 = sphi 0, %s115
      %s119 = sphi 0, %s118
      %s135 = sphi 0, %s119
    $region4: #{tpu_custom_call.1} parent=1 // loop_header_branch
      %17 = sbr.rel (%p15) target = $region8
    $region5: #{tpu_custom_call.1} parent=1 // loop_body
      %s19 = ssub.s32 %s14, 1
      %s20 = ssub.s32 %s14, 2
      %s27 = sadd.s32 1, %s22
      %p28 = scmp.ge.s32.totalorder %s27, 1
      %s29 = scalar_select %p28, 0, %s27
      %s30 = sadd.s32 1, %s21
      %s31 = scalar_select %p28, %s30, %s21
      %p32 = scmp.ge.s32.totalorder %s31, 2
      %s33 = scalar_select %p32, 0, %s31
      %s34 = ssub.s32 %s21, %s33
      %s35 = ssub.s32 %s22, %s29
      %s36 = sor.u32 %s34, %s35
      %p37 = scmp.eq.s32.totalorder %s36, 0
      %s39 = sadd.s32 %s38, 1
      %s40 = scalar_select %p37, %s38, %s39
      %p43 = pneg %p37
      %p44 = scmp.eq.s32.totalorder %s14, 1
      %p45 = por %p43, %p44
      %p46 = scmp.ne.s32.totalorder %s38, %s41
      %p47 = scmp.eq.s32.totalorder %s14, 0
      %p48 = por %p46, %p47
      %p49 = scmp.ne.s32.totalorder %s38, %s41
      %p50 = scmp.eq.s32.totalorder %s19, 1
      %p51 = por %p49, %p50
      %p52 = scmp.ne.s32.totalorder %s41, %s42
      %p53 = scmp.eq.s32.totalorder %s19, 0
      %p54 = por %p52, %p53
      %p55 = scmp.ne.s32.totalorder %s41, %s42
      %p56 = scmp.eq.s32.totalorder %s20, 1
      %p57 = por %p55, %p56
      %p59 = scmp.ne.s32.totalorder %s42, %s58
      %p60 = scmp.eq.s32.totalorder %s20, 0
      %p61 = por %p59, %p60
      %s63 = sadd.s32 %s62, 1
      %p66 = scmp.eq.s32.totalorder %s14, 1
      %p67 = scmp.ne.s32.totalorder %s62, %s64
      %p68 = scmp.eq.s32.totalorder %s14, 0
      %p69 = por %p67, %p68
      %p70 = scmp.ne.s32.totalorder %s62, %s64
      %p71 = scmp.eq.s32.totalorder %s19, 1
      %p72 = por %p70, %p71
      %p73 = scmp.ne.s32.totalorder %s64, %s65
      %p74 = scmp.eq.s32.totalorder %s19, 0
      %p75 = por %p73, %p74
      %p76 = scmp.ne.s32.totalorder %s64, %s65
      %p77 = scmp.eq.s32.totalorder %s20, 1
      %p78 = por %p76, %p77
      %p80 = scmp.ne.s32.totalorder %s65, %s79
      %p81 = scmp.eq.s32.totalorder %s20, 0
      %p82 = por %p80, %p81
      %s83 = ssub.s32 %s21, %s33
      %s84 = ssub.s32 %s22, %s29
      %s85 = sor.u32 %s83, %s84
      %p86 = scmp.eq.s32.totalorder %s85, 0
      %s88 = sadd.s32 %s87, 1
      %s89 = scalar_select %p86, %s87, %s88
      %p92 = pneg %p86
      %p93 = scmp.eq.s32.totalorder %s14, 1
      %p94 = por %p92, %p93
      %p95 = scmp.ne.s32.totalorder %s87, %s90
      %p96 = scmp.eq.s32.totalorder %s14, 0
      %p97 = por %p95, %p96
      %p98 = scmp.ne.s32.totalorder %s87, %s90
      %p99 = scmp.eq.s32.totalorder %s19, 1
      %p100 = por %p98, %p99
      %p101 = scmp.ne.s32.totalorder %s90, %s91
      %p102 = scmp.eq.s32.totalorder %s19, 0
      %p103 = por %p101, %p102
      %p104 = scmp.ne.s32.totalorder %s90, %s91
      %p105 = scmp.eq.s32.totalorder %s20, 1
      %p106 = por %p104, %p105
      %p108 = scmp.ne.s32.totalorder %s91, %s107
      %p109 = scmp.eq.s32.totalorder %s20, 0
      %p110 = por %p108, %p109
      %s111 = ssub.s32 %s21, %s33
      %s112 = ssub.s32 %s22, %s29
      %s113 = sor.u32 %s111, %s112
      %p114 = scmp.eq.s32.totalorder %s113, 0
      %s116 = sadd.s32 %s115, 1
      %s117 = scalar_select %p114, %s115, %s116
      %p120 = pneg %p114
      %p121 = scmp.eq.s32.totalorder %s14, 1
      %p122 = por %p120, %p121
      %p123 = scmp.ne.s32.totalorder %s115, %s118
      %p124 = scmp.eq.s32.totalorder %s14, 0
      %p125 = por %p123, %p124
      %p126 = scmp.ne.s32.totalorder %s115, %s118
      %p127 = scmp.eq.s32.totalorder %s19, 1
      %p128 = por %p126, %p127
      %p129 = scmp.ne.s32.totalorder %s118, %s119
      %p130 = scmp.eq.s32.totalorder %s19, 0
      %p131 = por %p129, %p130
      %p132 = scmp.ne.s32.totalorder %s118, %s119
      %p133 = scmp.eq.s32.totalorder %s20, 1
      %p134 = por %p132, %p133
      %p136 = scmp.ne.s32.totalorder %s119, %s135
      %p137 = scmp.eq.s32.totalorder %s20, 0
      %p138 = por %p136, %p137
      %p139 = scmp.le.s32.totalorder 1, %s14
      %p140 = scmp.lt.s32.totalorder %s14, 3
      %p141 = pnand %p139, %p140
      %p142 = pneg %p141
      // Predicated region
      $region9: #{tpu_custom_call.1} parent=5 // pred_check
        _
      $region10: #{tpu_custom_call.1} parent=5 // pred_check_branch
        %144 = sbr.rel (%p141) target = $region12
      $region11: #{tpu_custom_call.1} parent=5 // pred_region
        %s145 = ssub.s32 %s14, 1
        // Predicated region
        $region13: #{tpu_custom_call.1} parent=11 // pred_check
          %p146 = pneg %p75
        $region14: #{tpu_custom_call.1} parent=11 // pred_check_branch
          %148 = sbr.rel (%p146) target = $region16
        $region15: #{tpu_custom_call.1} parent=11 // pred_region
          %150 = vsyncadd [#allocation5], 0
          %s151 = sshll.u32 %s1, 4
          %s152 = int_to_ptr.hbm [resolvable:$true] %s151
          %s153 = sshll.u32 [#allocation4], 4
          %s154 = int_to_ptr.vmem [resolvable:$true] %s153
          %159 = dma.hbm_to_vmem [thread:$0]  %s152, 256, %s154, [#allocation5], 64, 64, 4
        $region16: #{tpu_custom_call.1} parent=11 // pred_fallthru
          _
      $region12: #{tpu_custom_call.1} parent=5 // pred_fallthru
        _
      %p160 = scmp.lt.s32.totalorder %s14, 2
      // Predicated region
      $region17: #{tpu_custom_call.1} parent=5 // pred_check
        %p161 = pneg %p160
      $region18: #{tpu_custom_call.1} parent=5 // pred_check_branch
        %163 = sbr.rel (%p161) target = $region20
      $region19: #{tpu_custom_call.1} parent=5 // pred_region
        // Predicated region
        $region21: #{tpu_custom_call.1} parent=19 // pred_check
          %p164 = pneg %p48
        $region22: #{tpu_custom_call.1} parent=19 // pred_check_branch
          %166 = sbr.rel (%p164) target = $region24
        $region23: #{tpu_custom_call.1} parent=19 // pred_region
          %s167 = sand.u32 %s38, 1
          %s168 = scalar_lea.sflag [#allocation3], %s167
          %s169 = sand.u32 %s38, 1
          %s170 = smul.addr %s169, 32
          %s171 = scalar_lea.vmem [#allocation2], %s170
          %s172 = smul.u32 4, %s22
          %174 = vsyncadd %s168, 0
          %s175 = smul.addr %s21, 4
          %s176 = sadd.s32 %s172, %s175
          %s177 = smul.addr %s176, 8
          %s178 = scalar_lea.hbm %s0, %s177
          %s179 = sshll.u32 %s178, 4
          %s180 = int_to_ptr.hbm [resolvable:$true] %s179
          %s181 = sshll.u32 %s171, 4
          %s182 = int_to_ptr.vmem [resolvable:$true] %s181
          %187 = dma.hbm_to_vmem [thread:$0]  %s180, 512, %s182, %s168, 128, 128, 8
        $region24: #{tpu_custom_call.1} parent=19 // pred_fallthru
          _
      $region20: #{tpu_custom_call.1} parent=5 // pred_fallthru
        _
      %p188 = scmp.le.s32.totalorder 1, %s14
      %p189 = scmp.lt.s32.totalorder %s14, 3
      %p190 = pnand %p188, %p189
      %p191 = pneg %p190
      // Predicated region
      $region25: #{tpu_custom_call.1} parent=5 // pred_check
        _
      $region26: #{tpu_custom_call.1} parent=5 // pred_check_branch
        %193 = sbr.rel (%p190) target = $region28
      $region27: #{tpu_custom_call.1} parent=5 // pred_region
        %s194 = ssub.s32 %s14, 1
        %s195 = sand.u32 %s41, 1
        %s196 = scalar_lea.sflag [#allocation3], %s195
        %s197 = sand.u32 %s41, 1
        %s198 = smul.addr %s197, 32
        %s199 = scalar_lea.vmem [#allocation2], %s198
        // Predicated region
        $region29: #{tpu_custom_call.1} parent=27 // pred_check
          %p200 = pneg %p54
        $region30: #{tpu_custom_call.1} parent=27 // pred_check_branch
          %202 = sbr.rel (%p200) target = $region32
        $region31: #{tpu_custom_call.1} parent=27 // pred_region
          %204 = dma.done %s196, 512
        $region32: #{tpu_custom_call.1} parent=27 // pred_fallthru
          _
        // Predicated region
        $region33: #{tpu_custom_call.1} parent=27 // pred_check
          %p205 = pneg %p75
        $region34: #{tpu_custom_call.1} parent=27 // pred_check_branch
          %207 = sbr.rel (%p205) target = $region36
        $region35: #{tpu_custom_call.1} parent=27 // pred_region
          %209 = dma.done [#allocation5], 256
        $region36: #{tpu_custom_call.1} parent=27 // pred_fallthru
          _
        %s210 = sand.u32 %s41, 1
        %s211 = scalar_lea.sflag [#allocation3], %s210
        %s212 = sand.u32 %s41, 1
        %s213 = smul.addr %s212, 32
        %s214 = scalar_lea.vmem [#allocation2], %s213
        %p215 = pneg %p54
        %p216 = pneg %p51
        %p217 = pneg %p75
        %p218 = pneg %p72
        %p219 = pneg %p103
        %p220 = pneg %p100
        %s221 = smul.u32 4, %s24
        %p222 = scmp.lt.s32.totalorder %s23, 1
        %s223 = scalar_select %p222, %s23, 1
        %p224 = scmp.lt.s32.totalorder %s221, 3
        %s225 = scalar_select %p224, %s221, 3
        %s226 = smul.addr %s223, 4
        %s227 = sadd.s32 %s225, %s226
        %s228 = smul.addr %s227, 8
        %s229 = scalar_lea.vmem %s2, %s228
        %p230 = pneg %p131
        %p231 = pneg %p128
        %s232 = smul.u32 4, %s24
        %p233 = scmp.lt.s32.totalorder %s23, 1
        %s234 = scalar_select %p233, %s23, 1
        %p235 = scmp.lt.s32.totalorder %s232, 3
        %s236 = scalar_select %p235, %s232, 3
        %s237 = smul.addr %s234, 12
        %s238 = sadd.s32 %s236, %s237
        %s239 = smul.addr %s238, 8
        %s240 = scalar_lea.vmem %s3, %s239
        %s241 = smul.u32 4, %s24
        %s242 = smul.u32 4, %s24
        %p243 = scmp.lt.s32.totalorder %s23, 1
        %s244 = scalar_select %p243, %s23, 1
        %p245 = scmp.lt.s32.totalorder %s242, 3
        %s246 = scalar_select %p245, %s242, 3
        %s247 = smul.addr %s244, 4
        %s248 = sadd.s32 %s246, %s247
        %s249 = smul.addr %s248, 8
        %s250 = scalar_lea.vmem %s2, %s249
        %s251 = smul.u32 4, %s24
        %s252 = smul.u32 4, %s24
        %p253 = scmp.lt.s32.totalorder %s23, 1
        %s254 = scalar_select %p253, %s23, 1
        %p255 = scmp.lt.s32.totalorder %s252, 3
        %s256 = scalar_select %p255, %s252, 3
        %s257 = smul.addr %s254, 12
        %s258 = sadd.s32 %s256, %s257
        %s259 = smul.addr %s258, 8
        %s260 = scalar_lea.vmem %s3, %s259
        %s261 = smul.u32 4, %s24
        %v263 = vld [vmem:[%s199] sm:$0xff]
        %v264 = vld [vmem:[%s199 + $0x8] sm:$0xff]
        %v265 = vld [vmem:[%s199 + $0x10] sm:$0xff]
        %v266 = vld [vmem:[%s199 + $0x18] sm:$0xff]
        %v267 = vpack.c.bf16 %v264, %v263
        %v268 = vpack.c.bf16 %v266, %v265
        %v269 = vld [vmem:[#allocation4] sm:$0xf]
        %v270 = vld [vmem:[#allocation4 + $0x4] sm:$0xf]
        %v271 = vld [vmem:[#allocation4 + $0x8] sm:$0xf]
        %v272 = vld [vmem:[#allocation4 + $0xc] sm:$0xf]
        %v277 = vunpack.c.l.b16 %v269
        %v278 = vunpack.c.l.b16 %v270
        %v279 = vunpack.c.l.b16 %v271
        %v280 = vunpack.c.l.b16 %v272
        %v281 = vpack.c.b16 %v278, %v277
        %v282 = vpack.c.b16 %v280, %v279
        %vm285 = vcmask 261120
        %v287 = vsel %vm285, %v267, 0
        %v290 = vsel %vm285, %v268, 0
        %292 = vmatpush.bf16.msra.mxu0 0
        %293 = vmatpush.bf16.msra.mxu0 0
        %294 = vmatpush.bf16.msra.mxu0 0
        %295 = vmatpush.bf16.msra.mxu0 0
        %296 = vmatpush.bf16.msra.mxu0 0
        %297 = vmatpush.bf16.msra.mxu0 0
        %298 = vmatpush.bf16.msra.mxu0 %v282
        %299 = vmatpush.bf16.msra.mxu0 %v281
        %300 = vmatmul.bf16.gmra.mxu0 %v287
        %v301 = vpop.f32.mrf.mxu0
        %v302 = vadd.f32 0.0, %v301
        %v303 = vpop.f32.mrf.mxu0
        %v304 = vadd.f32 0.0, %v303
        %305 = vmatmul.bf16.gmra.mxu0 %v290
        %v306 = vpop.f32.mrf.mxu0
        %v307 = vadd.f32 0.0, %v306
        %v308 = vpop.f32.mrf.mxu0
        %v309 = vadd.f32 0.0, %v308
        %310 = vdwg.mxu0
        %vm311 = vcmask 64512
        %312 = vst.msk [vmem:[%s250] sm:$0xff] %vm311, %v302
        %313 = vst.msk [vmem:[%s250 + $0x8] sm:$0xff] %vm311, %v304
        %314 = vst.msk [vmem:[%s250 + $0x10] sm:$0xff] %vm311, %v307
        %315 = vst.msk [vmem:[%s250 + $0x18] sm:$0xff] %vm311, %v309
        %320 = vrot.lane.b32.xlu0 %v302, 120
        %v321 = vpop.permute.xlu0 %320
        %322 = vrot.lane.b32.xlu0 %v304, 120
        %v323 = vpop.permute.xlu0 %322
        %324 = vrot.lane.b32.xlu0 %v307, 120
        %v325 = vpop.permute.xlu0 %324
        %326 = vrot.lane.b32.xlu0 %v309, 120
        %v327 = vpop.permute.xlu0 %326
        %332 = vst.msk [vmem:[%s260] sm:$0xff] %vm311, %v321
        %333 = vst.msk [vmem:[%s260 + $0x8] sm:$0xff] %vm311, %v323
        %334 = vst.msk [vmem:[%s260 + $0x10] sm:$0xff] %vm311, %v325
        %335 = vst.msk [vmem:[%s260 + $0x18] sm:$0xff] %vm311, %v327
        %336 = vrot.lane.b32.xlu0 %v302, 112
        %v337 = vpop.permute.xlu0 %336
        %338 = vrot.lane.b32.xlu0 %v304, 112
        %v339 = vpop.permute.xlu0 %338
        %340 = vrot.lane.b32.xlu0 %v307, 112
        %v341 = vpop.permute.xlu0 %340
        %342 = vrot.lane.b32.xlu0 %v309, 112
        %v343 = vpop.permute.xlu0 %342
        %s348 = scalar_lea.vmem %s260, 32
        %349 = vst.msk [vmem:[%s348] sm:$0xff] %vm311, %v337
        %350 = vst.msk [vmem:[%s348 + $0x8] sm:$0xff] %vm311, %v339
        %351 = vst.msk [vmem:[%s348 + $0x10] sm:$0xff] %vm311, %v341
        %352 = vst.msk [vmem:[%s348 + $0x18] sm:$0xff] %vm311, %v343
        %353 = vrot.lane.b32.xlu0 %v302, 104
        %v354 = vpop.permute.xlu0 %353
        %355 = vrot.lane.b32.xlu0 %v304, 104
        %v356 = vpop.permute.xlu0 %355
        %357 = vrot.lane.b32.xlu0 %v307, 104
        %v358 = vpop.permute.xlu0 %357
        %359 = vrot.lane.b32.xlu0 %v309, 104
        %v360 = vpop.permute.xlu0 %359
        %s365 = scalar_lea.vmem %s260, 64
        %366 = vst.msk [vmem:[%s365] sm:$0xff] %vm311, %v354
        %367 = vst.msk [vmem:[%s365 + $0x8] sm:$0xff] %vm311, %v356
        %368 = vst.msk [vmem:[%s365 + $0x10] sm:$0xff] %vm311, %v358
        %369 = vst.msk [vmem:[%s365 + $0x18] sm:$0xff] %vm311, %v360
        %s370 = smul.u32 4, %s24
        %p371 = scmp.lt.s32.totalorder %s23, 1
        %s372 = scalar_select %p371, %s23, 1
        %p373 = scmp.lt.s32.totalorder %s370, 3
        %s374 = scalar_select %p373, %s370, 3
        %s375 = smul.addr %s372, 4
        %s376 = sadd.s32 %s374, %s375
        %s377 = smul.addr %s376, 8
        %s378 = scalar_lea.vmem %s2, %s377
        %s379 = smul.u32 4, %s24
        %p380 = scmp.lt.s32.totalorder %s23, 1
        %s381 = scalar_select %p380, %s23, 1
        %p382 = scmp.lt.s32.totalorder %s379, 3
        %s383 = scalar_select %p382, %s379, 3
        %s384 = smul.addr %s381, 12
        %s385 = sadd.s32 %s383, %s384
        %s386 = smul.addr %s385, 8
        %s387 = scalar_lea.vmem %s3, %s386
        // Predicated region
        $region37: #{tpu_custom_call.1} parent=27 // pred_check
          %p388 = pneg %p100
        $region38: #{tpu_custom_call.1} parent=27 // pred_check_branch
          %390 = sbr.rel (%p388) target = $region40
        $region39: #{tpu_custom_call.1} parent=27 // pred_region
          %s391 = smul.u32 4, %s24
        $region40: #{tpu_custom_call.1} parent=27 // pred_fallthru
          _
        // Predicated region
        $region41: #{tpu_custom_call.1} parent=27 // pred_check
          %p392 = pneg %p128
        $region42: #{tpu_custom_call.1} parent=27 // pred_check_branch
          %394 = sbr.rel (%p392) target = $region44
        $region43: #{tpu_custom_call.1} parent=27 // pred_region
          %s395 = smul.u32 4, %s24
        $region44: #{tpu_custom_call.1} parent=27 // pred_fallthru
          _
      $region28: #{tpu_custom_call.1} parent=5 // pred_fallthru
        _
      %p396 = scmp.le.s32.totalorder 2, %s14
      // Predicated region
      $region45: #{tpu_custom_call.1} parent=5 // pred_check
        %p397 = pneg %p396
      $region46: #{tpu_custom_call.1} parent=5 // pred_check_branch
        %399 = sbr.rel (%p397) target = $region48
      $region47: #{tpu_custom_call.1} parent=5 // pred_region
        %s400 = ssub.s32 %s14, 2
        // Predicated region
        $region49: #{tpu_custom_call.1} parent=47 // pred_check
          %p401 = pneg %p106
        $region50: #{tpu_custom_call.1} parent=47 // pred_check_branch
          %403 = sbr.rel (%p401) target = $region52
        $region51: #{tpu_custom_call.1} parent=47 // pred_region
          %s404 = smul.u32 4, %s26
          %p405 = scmp.lt.s32.totalorder %s25, 1
          %s406 = scalar_select %p405, %s25, 1
          %p407 = scmp.lt.s32.totalorder %s404, 3
          %s408 = scalar_select %p407, %s404, 3
          %s409 = smul.addr %s406, 4
          %s410 = sadd.s32 %s408, %s409
          %s411 = smul.addr %s410, 8
          %s412 = scalar_lea.vmem %s2, %s411
        $region52: #{tpu_custom_call.1} parent=47 // pred_fallthru
          _
        // Predicated region
        $region53: #{tpu_custom_call.1} parent=47 // pred_check
          %p413 = pneg %p134
        $region54: #{tpu_custom_call.1} parent=47 // pred_check_branch
          %415 = sbr.rel (%p413) target = $region56
        $region55: #{tpu_custom_call.1} parent=47 // pred_region
          %s416 = smul.u32 4, %s26
          %p417 = scmp.lt.s32.totalorder %s25, 1
          %s418 = scalar_select %p417, %s25, 1
          %p419 = scmp.lt.s32.totalorder %s416, 3
          %s420 = scalar_select %p419, %s416, 3
          %s421 = smul.addr %s418, 12
          %s422 = sadd.s32 %s420, %s421
          %s423 = smul.addr %s422, 8
          %s424 = scalar_lea.vmem %s3, %s423
        $region56: #{tpu_custom_call.1} parent=47 // pred_fallthru
          _
      $region48: #{tpu_custom_call.1} parent=5 // pred_fallthru
        _
    $region6: #{tpu_custom_call.1} parent=1 // loop_footer
      %s18 = sadd.s32 1, %s14
    $region7: #{tpu_custom_call.1} parent=1 // loop_footer_branch
      %13 = sbr.rel target = $region3
    $region8: #{tpu_custom_call.1} parent=1 // loop_exit
      _
    %425 = vsyncpa [#allocation3], 1
    %s426 = scalar_lea.sflag [#allocation3], 1
    %427 = vsyncpa %s426, 1
    %428 = vsyncpa [#allocation5], 1

</llo_original>
